<compile_context>
chip_gen: v6e
topology: v6e:2x2x1
jax: 0.10.0
libtpu: 0.0.40
codegen_flags: <defaults>
</compile_context>

<pallas_src>
import functools
import math

import jax
import jax.numpy as jnp
from jax.experimental import pallas as pl
from jax.experimental.pallas import tpu as pltpu

NUM_GROUPS = 32
EPS = 1e-6

# Production tile targets; sized so per-step VMEM stays well inside v7x's
# 64 MiB even at C=512, HW=4096.
DEFAULT_TQ = 256   # query rows per attention tile
DEFAULT_TK = 512   # key/value rows per attention tile
DEFAULT_TS = 512   # spatial rows per GroupNorm / QKV tile


# ----------------------------------------------------------------------------
# small helpers
# ----------------------------------------------------------------------------
def _pick_tile(n, target):
    """Largest divisor of n that is <= target and a multiple of 8, else n."""
    if n <= target:
        return n
    for t in range(target, 7, -1):
        if n % t == 0 and t % 8 == 0:
            return t
    return n


def _nbytes(shape, dtype):
    return math.prod(shape) * jnp.dtype(dtype).itemsize


def _vmem_limit(*block_bytes):
    """Explicit scoped-VMEM request: computed block+scratch footprint with
    headroom, clamped so it fits every TPU generation (v7x: 64 MiB total)."""
    est = 2 * sum(block_bytes) + (8 << 20)
    return int(min(max(est, 32 << 20), 48 << 20))


def _const_spec(shape):
    """BlockSpec for a grid-invariant parameter: constant index map and a
    single buffer (no pointless double-buffering of weights/biases)."""
    zeros = (0,) * len(shape)
    return pl.BlockSpec(shape, lambda *_: zeros, pipeline_mode=pl.Buffered(1))


# ----------------------------------------------------------------------------
# pass 1: GroupNorm statistics
# ----------------------------------------------------------------------------
def _gn_stats_kernel(x_ref, gmap_ref, mean_ref, rstd_ref, sum_sc, sumsq_sc,
                     *, inv_count):
    """Accumulate per-channel sums over spatial tiles; finalize group stats.

    x_ref:    (1, ts, C)  input spatial tile (f32)
    gmap_ref: (G, C)      one-hot group->channel map
    mean_ref: (1, 1, C)   per-channel group mean (written at last tile)
    rstd_ref: (1, 1, C)   per-channel 1/sqrt(var+eps) (written at last tile)
    """
    s = pl.program_id(1)

    @pl.when(s == 0)
    def _init():
        sum_sc[...] = jnp.zeros_like(sum_sc)
        sumsq_sc[...] = jnp.zeros_like(sumsq_sc)

    x = x_ref[0].astype(jnp.float32)                         # (ts, C)
    ones_row = jnp.ones((1, x.shape[0]), jnp.float32)
    # Channel sums as a (1, ts)x(ts, C) matmul: keeps the sublane reduction on
    # the MXU instead of the XLU.
    sum_sc[...] += jnp.dot(ones_row, x, preferred_element_type=jnp.float32)
    sumsq_sc[...] += jnp.dot(ones_row, x * x, preferred_element_type=jnp.float32)

    @pl.when(s == pl.num_programs(1) - 1)
    def _finalize():
        gmap = gmap_ref[...]                                 # (G, C)
        nt = (((1,), (1,)), ((), ()))                        # contract over C
        grp_sum = jax.lax.dot_general(sum_sc[...], gmap, nt,
                                      preferred_element_type=jnp.float32)   # (1, G)
        grp_sumsq = jax.lax.dot_general(sumsq_sc[...], gmap, nt,
                                        preferred_element_type=jnp.float32)
        mean_g = grp_sum * inv_count
        # TODO(synk): one-pass E[x^2]-E[x]^2 variance; use a second centered
        # pass if inputs may have |mean| >> std.
        var_g = grp_sumsq * inv_count - mean_g * mean_g
        rstd_g = jax.lax.rsqrt(var_g + EPS)
        # broadcast group stats back to channels: (1, G) x (G, C)
        mean_ref[0] = jnp.dot(mean_g, gmap, preferred_element_type=jnp.float32)
        rstd_ref[0] = jnp.dot(rstd_g, gmap, preferred_element_type=jnp.float32)


# ----------------------------------------------------------------------------
# pass 2: normalize + fused QKV projection
# ----------------------------------------------------------------------------
def _gn_qkv_kernel(x_ref, mean_ref, rstd_ref, gamma_ref, beta_ref,
                   wqkv_ref, bqkv_ref, q_ref, k_ref, v_ref):
    """GroupNorm-apply + fused 1x1 q/k/v projection for one spatial tile."""
    c = q_ref.shape[-1]
    x = x_ref[0].astype(jnp.float32)                         # (ts, C)
    y = (x - mean_ref[0]) * rstd_ref[0]
    y = y * gamma_ref[...] + beta_ref[...]
    # bf16 operands on the MXU, f32 accumulation (scale for q folded into W/b).
    qkv = jnp.dot(y.astype(jnp.bfloat16), wqkv_ref[...],
                  preferred_element_type=jnp.float32) + bqkv_ref[...]   # (ts, 3C)
    q_ref[0] = qkv[:, :c].astype(q_ref.dtype)
    k_ref[0] = qkv[:, c:2 * c].astype(k_ref.dtype)
    v_ref[0] = qkv[:, 2 * c:].astype(v_ref.dtype)


# ----------------------------------------------------------------------------
# pass 3: flash attention + output projection + residual
# ----------------------------------------------------------------------------
def _flash_attn_kernel(q_ref, k_ref, v_ref, x_ref, wp_ref, bp_ref,
                       o_ref, m_sc, l_sc, acc_sc):
    """Online-softmax attention over k/v tiles for one (batch, q-tile)."""
    j = pl.program_id(2)

    @pl.when(j == 0)
    def _init():
        m_sc[...] = jnp.full_like(m_sc, -jnp.inf)
        l_sc[...] = jnp.zeros_like(l_sc)
        acc_sc[...] = jnp.zeros_like(acc_sc)

    q = q_ref[0]                                             # (tq, C) bf16
    k = k_ref[0]                                             # (tk, C) bf16
    # q @ k^T as an NT contraction over C (no materialized transpose).
    s = jax.lax.dot_general(q, k, (((1,), (1,)), ((), ())),
                            preferred_element_type=jnp.float32)          # (tq, tk)

    m_prev = m_sc[...]
    m_new = jnp.maximum(m_prev, jnp.max(s, axis=-1, keepdims=True))
    alpha = jnp.exp(m_prev - m_new)
    p = jnp.exp(s - m_new)
    l_sc[...] = alpha * l_sc[...] + jnp.sum(p, axis=-1, keepdims=True)
    acc_sc[...] = alpha * acc_sc[...] + jnp.dot(
        p.astype(jnp.bfloat16), v_ref[0], preferred_element_type=jnp.float32)
    m_sc[...] = m_new

    @pl.when(j == pl.num_programs(2) - 1)
    def _finalize():
        attn = acc_sc[...] * pl.reciprocal(l_sc[...], approx=True)       # (tq, C)
        h = jnp.dot(attn.astype(jnp.bfloat16), wp_ref[...],
                    preferred_element_type=jnp.float32) + bp_ref[...]
        # residual source read only here -> short live range for x
        o_ref[0] = (x_ref[0] + h).astype(o_ref.dtype)


# ----------------------------------------------------------------------------
# wrapper
# ----------------------------------------------------------------------------
def attn_block_pallas(x_bhwc, params, *, tq=DEFAULT_TQ, tk=DEFAULT_TK,
                      ts=DEFAULT_TS):
    """AttnBlock forward on a channels-last (B, HW, C) float32 tensor."""
    B, HW, C = x_bhwc.shape
    G = params["gmapT"].shape[0]
    ts = _pick_tile(HW, ts)
    tq = _pick_tile(HW, tq)
    tk = _pick_tile(HW, tk)
    ns, nq, nk = HW // ts, HW // tq, HW // tk
    f32, bf16 = jnp.float32, jnp.bfloat16

    # ---- pass 1: GroupNorm statistics (reduction over spatial tiles) ----
    mean, rstd = pl.pallas_call(
        functools.partial(_gn_stats_kernel,
                          inv_count=1.0 / float(HW * (C // G))),
        out_shape=(jax.ShapeDtypeStruct((B, 1, C), f32),
                   jax.ShapeDtypeStruct((B, 1, C), f32)),
        grid=(B, ns),
        in_specs=[
            pl.BlockSpec((1, ts, C), lambda b, s: (b, s, 0)),
            _const_spec((G, C)),
        ],
        out_specs=(pl.BlockSpec((1, 1, C), lambda b, s: (b, 0, 0)),
                   pl.BlockSpec((1, 1, C), lambda b, s: (b, 0, 0))),
        scratch_shapes=[pltpu.VMEM((1, C), f32), pltpu.VMEM((1, C), f32)],
        compiler_params=pltpu.CompilerParams(
            dimension_semantics=("parallel", "arbitrary"),
            vmem_limit_bytes=_vmem_limit(
                2 * _nbytes((ts, C), f32),        # x tile, double buffered
                _nbytes((G, C), f32),             # gmapT, single buffered
                4 * _nbytes((1, C), f32),         # mean/rstd output blocks
                2 * _nbytes((1, C), f32))),       # scratch
    )(x_bhwc, params["gmapT"])

    # ---- pass 2: normalize + fused QKV projection (bf16 outputs) ----
    q, k, v = pl.pallas_call(
        _gn_qkv_kernel,
        out_shape=tuple(jax.ShapeDtypeStruct((B, HW, C), bf16) for _ in range(3)),
        grid=(B, ns),
        in_specs=[
            pl.BlockSpec((1, ts, C), lambda b, s: (b, s, 0)),
            pl.BlockSpec((1, 1, C), lambda b, s: (b, 0, 0)),
            pl.BlockSpec((1, 1, C), lambda b, s: (b, 0, 0)),
            _const_spec((1, C)),            # gamma
            _const_spec((1, C)),            # beta
            _const_spec((C, 3 * C)),        # fused Wq|Wk|Wv (bf16)
            _const_spec((1, 3 * C)),        # fused bq|bk|bv (f32)
        ],
        out_specs=tuple(pl.BlockSpec((1, ts, C), lambda b, s: (b, s, 0))
                        for _ in range(3)),
        compiler_params=pltpu.CompilerParams(
            dimension_semantics=("parallel", "parallel"),
            vmem_limit_bytes=_vmem_limit(
                2 * _nbytes((ts, C), f32),
                6 * _nbytes((1, C), f32),
                _nbytes((C, 3 * C), bf16) + _nbytes((1, 3 * C), f32),
                6 * _nbytes((ts, C), bf16))),
    )(x_bhwc, mean, rstd, params["gamma"], params["beta"],
      params["wqkv"], params["bqkv"])

    # ---- pass 3: flash attention + output projection + residual ----
    out = pl.pallas_call(
        _flash_attn_kernel,
        out_shape=jax.ShapeDtypeStruct((B, HW, C), x_bhwc.dtype),
        grid=(B, nq, nk),
        in_specs=[
            pl.BlockSpec((1, tq, C), lambda b, i, j: (b, i, 0)),   # q
            pl.BlockSpec((1, tk, C), lambda b, i, j: (b, j, 0)),   # k
            pl.BlockSpec((1, tk, C), lambda b, i, j: (b, j, 0)),   # v
            pl.BlockSpec((1, tq, C), lambda b, i, j: (b, i, 0)),   # x (residual)
            _const_spec((C, C)),            # Wp^T (bf16)
            _const_spec((1, C)),            # bp (f32)
        ],
        out_specs=pl.BlockSpec((1, tq, C), lambda b, i, j: (b, i, 0)),
        scratch_shapes=[pltpu.VMEM((tq, 1), f32),     # running max
                        pltpu.VMEM((tq, 1), f32),     # running denom
                        pltpu.VMEM((tq, C), f32)],    # output accumulator
        compiler_params=pltpu.CompilerParams(
            dimension_semantics=("parallel", "parallel", "arbitrary"),
            vmem_limit_bytes=_vmem_limit(
                2 * _nbytes((tq, C), bf16),
                4 * _nbytes((tk, C), bf16),
                2 * _nbytes((tq, C), f32),            # residual x
                2 * _nbytes((tq, C), f32),            # output
                _nbytes((C, C), bf16) + _nbytes((1, C), f32),
                _nbytes((tq, C), f32) + 2 * _nbytes((tq, 1), f32))),
    )(q, k, v, x_bhwc, params["wpT"], params["bp"])
    return out


# ----------------------------------------------------------------------------
# parameter packing (PyTorch layout -> kernel layout)
# ----------------------------------------------------------------------------
def make_kernel_params(gamma, beta, Wq, bq, Wk, bk, Wv, bv, Wp, bp,
                       num_groups=NUM_GROUPS):
    C = gamma.shape[0]
    assert C % num_groups == 0, "GroupNorm requires C % num_groups == 0"
    scale = float(C) ** (-0.5)
    # Fuse the q/k/v 1x1-conv weights into a single (Cin, 3*Cout) operand and
    # fold the attention scale C^-0.5 into the q branch.
    wqkv = jnp.concatenate([Wq.T * scale, Wk.T, Wv.T], axis=1)
    bqkv = jnp.concatenate([bq * scale, bk, bv]).reshape(1, 3 * C)
    ch_group = jnp.arange(C) // (C // num_groups)
    gmapT = jax.nn.one_hot(ch_group, num_groups, dtype=jnp.float32).T   # (G, C)
    return dict(
        gamma=gamma.reshape(1, C).astype(jnp.float32),
        beta=beta.reshape(1, C).astype(jnp.float32),
        gmapT=gmapT,
        wqkv=wqkv.astype(jnp.bfloat16),
        bqkv=bqkv.astype(jnp.float32),
        wpT=Wp.T.astype(jnp.bfloat16),
        bp=bp.reshape(1, C).astype(jnp.float32),
    )


# ----------------------------------------------------------------------------
# pure-JAX reference mirroring the PyTorch module (NCHW, f32)
# ----------------------------------------------------------------------------
def ref_forward_nchw(x, gamma, beta, Wq, bq, Wk, bk, Wv, bv, Wp, bp):
    B, C, H, W = x.shape
    G = NUM_GROUPS
    cg = C // G
    xg = x.reshape(B, G, cg, H, W)
    mean = xg.mean(axis=(2, 3, 4), keepdims=True)
    var = ((xg - mean) ** 2).mean(axis=(2, 3, 4), keepdims=True)
    y = (xg - mean) / jnp.sqrt(var + EPS)
    y = y.reshape(B, C, H, W) * gamma.reshape(1, C, 1, 1) + beta.reshape(1, C, 1, 1)

    def conv1x1(inp, W_, b_):
        return jnp.einsum("bchw,oc->bohw", inp, W_) + b_.reshape(1, -1, 1, 1)

    q = conv1x1(y, Wq, bq)
    k = conv1x1(y, Wk, bk)
    v = conv1x1(y, Wv, bv)
    q = q.reshape(B, C, H * W).transpose(0, 2, 1)
    k = k.reshape(B, C, H * W)
    w_ = jnp.einsum("bic,bcj->bij", q, k) * (int(C) ** (-0.5))
    w_ = jax.nn.softmax(w_, axis=2)
    v = v.reshape(B, C, H * W)
    h = jnp.einsum("bcj,bij->bci", v, w_)
    h = h.reshape(B, C, H, W)
    h = conv1x1(h, Wp, bp)
    return x + h


if __name__ == "__main__":
    key = jax.random.PRNGKey(0)
    # Small-but-representative config: C=128 keeps the lane dim dense (no
    # masked partial stores) and HW=256 with 64-wide tiles exercises the
    # multi-tile stats accumulation and the online-softmax k/v loop.
    B, C, H, W = 2, 128, 16, 16
    HW = H * W

    ks = jax.random.split(key, 12)
    wstd = float(C) ** (-0.5)
    x_nchw = jax.random.normal(ks[0], (B, C, H, W), dtype=jnp.float32)
    gamma = 1.0 + 0.1 * jax.random.normal(ks[1], (C,), dtype=jnp.float32)
    beta = 0.1 * jax.random.normal(ks[2], (C,), dtype=jnp.float32)
    Wq = wstd * jax.random.normal(ks[3], (C, C), dtype=jnp.float32)
    bq = 0.05 * jax.random.normal(ks[4], (C,), dtype=jnp.float32)
    Wk = wstd * jax.random.normal(ks[5], (C, C), dtype=jnp.float32)
    bk = 0.05 * jax.random.normal(ks[6], (C,), dtype=jnp.float32)
    Wv = wstd * jax.random.normal(ks[7], (C, C), dtype=jnp.float32)
    bv = 0.05 * jax.random.normal(ks[8], (C,), dtype=jnp.float32)
    Wp = wstd * jax.random.normal(ks[9], (C, C), dtype=jnp.float32)
    bp = 0.05 * jax.random.normal(ks[10], (C,), dtype=jnp.float32)

    params = make_kernel_params(gamma, beta, Wq, bq, Wk, bk, Wv, bv, Wp, bp)

    # NCHW -> (B, HW, C)
    x_bhwc = x_nchw.reshape(B, C, HW).transpose(0, 2, 1)

    # Small tiles for the test so several q / k / stat tiles are exercised;
    # production calls use the (256, 512, 512) defaults.
    out_bhwc = attn_block_pallas(x_bhwc, params, tq=64, tk=64, ts=64)
    out_bhwc = jax.block_until_ready(out_bhwc)

    # back to NCHW and compare against the pure-f32 reference
    out_nchw = out_bhwc.transpose(0, 2, 1).reshape(B, C, H, W)
    ref = ref_forward_nchw(x_nchw, gamma, beta, Wq, bq, Wk, bk, Wv, bv, Wp, bp)

    # bf16 MXU operands (activations + weights) -> bf16-level tolerance.
    if not bool(jnp.allclose(out_nchw, ref, rtol=5e-2, atol=5e-2)):
        raise AssertionError("Pallas AttnBlock mismatch vs reference")
    print("KERNEL_OK")
</pallas_src>

<mosaic_0001>
module attributes {stable_mosaic.version = 11 : i64} {
  func.func @_gn_stats_kernel(%arg0: i32, %arg1: i32, %arg2: memref<1x64x128xf32, #tpu.memory_space<vmem>>, %arg3: memref<32x128xf32, #tpu.memory_space<vmem>>, %arg4: memref<1x1x128xf32, #tpu.memory_space<vmem>>, %arg5: memref<1x1x128xf32, #tpu.memory_space<vmem>>, %arg6: memref<1x128xf32, #tpu.memory_space<vmem>>, %arg7: memref<1x128xf32, #tpu.memory_space<vmem>>) attributes {dimension_semantics = [#tpu.dimension_semantics<parallel>, #tpu.dimension_semantics<arbitrary>], iteration_bounds = array<i64: 2, 4>, scalar_prefetch = 0 : i64, scratch_operands = 2 : i64, tpu.core_type = #tpu.core_type<tc>, window_params = [{transform_indices = @transform_0, window_bounds = array<i64: 1, 64, 128>}, {pipeline_mode = #tpu.pipeline_mode<synchronous>, transform_indices = @transform_1, window_bounds = array<i64: 32, 128>}, {transform_indices = @transform_2, window_bounds = array<i64: 1, 1, 128>}, {transform_indices = @transform_3, window_bounds = array<i64: 1, 1, 128>}]} {
    %c0_i32 = arith.constant 0 : i32
    %0 = arith.cmpi eq, %arg1, %c0_i32 : i32
    %1 = arith.extui %0 : i1 to i32
    %c0_i32_0 = arith.constant 0 : i32
    %2 = arith.cmpi ne, %1, %c0_i32_0 : i32
    scf.if %2 {
      %cst_14 = arith.constant 0.000000e+00 : f32
      %18 = vector.broadcast %cst_14 : f32 to vector<1x128xf32>
      %c0_15 = arith.constant 0 : index
      %c0_16 = arith.constant 0 : index
      %19 = vector.load %arg6[%c0_15, %c0_16] : memref<1x128xf32, #tpu.memory_space<vmem>>, vector<1x128xf32>
      tpu.vector_store %arg6[%c0_15, %c0_16], %18 {strides = array<i32>} : memref<1x128xf32, #tpu.memory_space<vmem>>, vector<1x128xf32>,
      %cst_17 = arith.constant 0.000000e+00 : f32
      %20 = vector.broadcast %cst_17 : f32 to vector<1x128xf32>
      %c0_18 = arith.constant 0 : index
      %c0_19 = arith.constant 0 : index
      %21 = vector.load %arg7[%c0_18, %c0_19] : memref<1x128xf32, #tpu.memory_space<vmem>>, vector<1x128xf32>
      tpu.vector_store %arg7[%c0_18, %c0_19], %20 {strides = array<i32>} : memref<1x128xf32, #tpu.memory_space<vmem>>, vector<1x128xf32>,
    } else {
    }
    %c0 = arith.constant 0 : index
    %c0_1 = arith.constant 0 : index
    %c0_2 = arith.constant 0 : index
    %3 = vector.load %arg2[%c0, %c0_1, %c0_2] : memref<1x64x128xf32, #tpu.memory_space<vmem>>, vector<1x64x128xf32>
    %4 = vector.shape_cast %3 : vector<1x64x128xf32> to vector<64x128xf32>
    %cst = arith.constant 1.000000e+00 : f32
    %5 = vector.broadcast %cst : f32 to vector<1x64xf32>
    %c0_3 = arith.constant 0 : index
    %c0_4 = arith.constant 0 : index
    %6 = vector.load %arg6[%c0_3, %c0_4] : memref<1x128xf32, #tpu.memory_space<vmem>>, vector<1x128xf32>
    %cst_5 = arith.constant dense<0.000000e+00> : vector<1x128xf32>
    %7 = tpu.matmul %5, %4, %cst_5 {dimension_numbers = #tpu.dot_dimension_numbers<[1], [0], [0], [1], [0, 0, 1, 1], [], []>} : vector<1x64xf32>, vector<64x128xf32>, vector<1x128xf32> -> vector<1x128xf32>
    %8 = arith.addf %6, %7 : vector<1x128xf32>
    %c0_6 = arith.constant 0 : index
    %c0_7 = arith.constant 0 : index
    %9 = vector.load %arg6[%c0_6, %c0_7] : memref<1x128xf32, #tpu.memory_space<vmem>>, vector<1x128xf32>
    tpu.vector_store %arg6[%c0_6, %c0_7], %8 {strides = array<i32>} : memref<1x128xf32, #tpu.memory_space<vmem>>, vector<1x128xf32>,
    %c0_8 = arith.constant 0 : index
    %c0_9 = arith.constant 0 : index
    %10 = vector.load %arg7[%c0_8, %c0_9] : memref<1x128xf32, #tpu.memory_space<vmem>>, vector<1x128xf32>
    %11 = arith.mulf %4, %4 : vector<64x128xf32>
    %cst_10 = arith.constant dense<0.000000e+00> : vector<1x128xf32>
    %12 = tpu.matmul %5, %11, %cst_10 {dimension_numbers = #tpu.dot_dimension_numbers<[1], [0], [0], [1], [0, 0, 1, 1], [], []>} : vector<1x64xf32>, vector<64x128xf32>, vector<1x128xf32> -> vector<1x128xf32>
    %13 = arith.addf %10, %12 : vector<1x128xf32>
    %c0_11 = arith.constant 0 : index
    %c0_12 = arith.constant 0 : index
    %14 = vector.load %arg7[%c0_11, %c0_12] : memref<1x128xf32, #tpu.memory_space<vmem>>, vector<1x128xf32>
    tpu.vector_store %arg7[%c0_11, %c0_12], %13 {strides = array<i32>} : memref<1x128xf32, #tpu.memory_space<vmem>>, vector<1x128xf32>,
    %c3_i32 = arith.constant 3 : i32
    %15 = arith.cmpi eq, %arg1, %c3_i32 : i32
    %16 = arith.extui %15 : i1 to i32
    %c0_i32_13 = arith.constant 0 : i32
    %17 = arith.cmpi ne, %16, %c0_i32_13 : i32
    scf.if %17 {
      %c0_14 = arith.constant 0 : index
      %c0_15 = arith.constant 0 : index
      %18 = vector.load %arg3[%c0_14, %c0_15] : memref<32x128xf32, #tpu.memory_space<vmem>>, vector<32x128xf32>
      %c0_16 = arith.constant 0 : index
      %c0_17 = arith.constant 0 : index
      %19 = vector.load %arg6[%c0_16, %c0_17] : memref<1x128xf32, #tpu.memory_space<vmem>>, vector<1x128xf32>
      %cst_18 = arith.constant dense<0.000000e+00> : vector<1x32xf32>
      %20 = tpu.matmul %19, %18, %cst_18 {dimension_numbers = #tpu.dot_dimension_numbers<[1], [1], [0], [0], [0, 0, 1, 0], [], []>} : vector<1x128xf32>, vector<32x128xf32>, vector<1x32xf32> -> vector<1x32xf32>
      %c0_19 = arith.constant 0 : index
      %c0_20 = arith.constant 0 : index
      %21 = vector.load %arg7[%c0_19, %c0_20] : memref<1x128xf32, #tpu.memory_space<vmem>>, vector<1x128xf32>
      %cst_21 = arith.constant dense<0.000000e+00> : vector<1x32xf32>
      %22 = tpu.matmul %21, %18, %cst_21 {dimension_numbers = #tpu.dot_dimension_numbers<[1], [1], [0], [0], [0, 0, 1, 0], [], []>} : vector<1x128xf32>, vector<32x128xf32>, vector<1x32xf32> -> vector<1x32xf32>
      %cst_22 = arith.constant 9.765625E-4 : f32
      %23 = vector.broadcast %cst_22 : f32 to vector<1x32xf32>
      %24 = arith.mulf %20, %23 : vector<1x32xf32>
      %cst_23 = arith.constant 9.765625E-4 : f32
      %25 = vector.broadcast %cst_23 : f32 to vector<1x32xf32>
      %26 = arith.mulf %22, %25 : vector<1x32xf32>
      %27 = arith.mulf %24, %24 : vector<1x32xf32>
      %28 = arith.subf %26, %27 : vector<1x32xf32>
      %cst_24 = arith.constant 9.99999997E-7 : f32
      %29 = vector.broadcast %cst_24 : f32 to vector<1x32xf32>
      %30 = arith.addf %28, %29 : vector<1x32xf32>
      %31 = math.rsqrt %30 : vector<1x32xf32>
      %cst_25 = arith.constant dense<0.000000e+00> : vector<1x128xf32>
      %32 = tpu.matmul %24, %18, %cst_25 {dimension_numbers = #tpu.dot_dimension_numbers<[1], [0], [0], [1], [0, 0, 1, 1], [], []>} : vector<1x32xf32>, vector<32x128xf32>, vector<1x128xf32> -> vector<1x128xf32>
      %c0_26 = arith.constant 0 : index
      %c0_27 = arith.constant 0 : index
      %c0_28 = arith.constant 0 : index
      %33 = vector.load %arg4[%c0_26, %c0_27, %c0_28] : memref<1x1x128xf32, #tpu.memory_space<vmem>>, vector<1x1x128xf32>
      %34 = vector.shape_cast %33 : vector<1x1x128xf32> to vector<1x128xf32>
      %35 = vector.shape_cast %32 : vector<1x128xf32> to vector<1x1x128xf32>
      tpu.vector_store %arg4[%c0_26, %c0_27, %c0_28], %35 {strides = array<i32>} : memref<1x1x128xf32, #tpu.memory_space<vmem>>, vector<1x1x128xf32>,
      %cst_29 = arith.constant dense<0.000000e+00> : vector<1x128xf32>
      %36 = tpu.matmul %31, %18, %cst_29 {dimension_numbers = #tpu.dot_dimension_numbers<[1], [0], [0], [1], [0, 0, 1, 1], [], []>} : vector<1x32xf32>, vector<32x128xf32>, vector<1x128xf32> -> vector<1x128xf32>
      %c0_30 = arith.constant 0 : index
      %c0_31 = arith.constant 0 : index
      %c0_32 = arith.constant 0 : index
      %37 = vector.load %arg5[%c0_30, %c0_31, %c0_32] : memref<1x1x128xf32, #tpu.memory_space<vmem>>, vector<1x1x128xf32>
      %38 = vector.shape_cast %37 : vector<1x1x128xf32> to vector<1x128xf32>
      %39 = vector.shape_cast %36 : vector<1x128xf32> to vector<1x1x128xf32>
      tpu.vector_store %arg5[%c0_30, %c0_31, %c0_32], %39 {strides = array<i32>} : memref<1x1x128xf32, #tpu.memory_space<vmem>>, vector<1x1x128xf32>,
    } else {
    }
    return
  }
  func.func @transform_0(%arg0: i32, %arg1: i32) -> (i32, i32, i32) {
    %c0_i32 = arith.constant 0 : i32
    %c0_i32_0 = arith.constant 0 : i32
    return %arg0, %arg1, %c0_i32 : i32, i32, i32
  }
  func.func @transform_1(%arg0: i32, %arg1: i32) -> (i32, i32) {
    %c0_i32 = arith.constant 0 : i32
    %c0_i32_0 = arith.constant 0 : i32
    %c0_i32_1 = arith.constant 0 : i32
    return %c0_i32, %c0_i32_0 : i32, i32
  }
  func.func @transform_2(%arg0: i32, %arg1: i32) -> (i32, i32, i32) {
    %c0_i32 = arith.constant 0 : i32
    %c0_i32_0 = arith.constant 0 : i32
    %c0_i32_1 = arith.constant 0 : i32
    return %arg0, %c0_i32, %c0_i32_0 : i32, i32, i32
  }
  func.func @transform_3(%arg0: i32, %arg1: i32) -> (i32, i32, i32) {
    %c0_i32 = arith.constant 0 : i32
    %c0_i32_0 = arith.constant 0 : i32
    %c0_i32_1 = arith.constant 0 : i32
    return %arg0, %c0_i32, %c0_i32_0 : i32, i32, i32
  }
}

</mosaic_0001>

<llo_original>
// kernel: tpu_custom_call.1
$region0: #{tpu_custom_call.1}
  #allocation0 [shape = 'u32[]', space=smem, size = 0x4, offset = 0x4, fixed_abs, tag = 'smem constant byte address 0x4 - core index']
  #allocation1 [shape = 'u32[144,128]{1,0:T(1,128)}', space=vmem, size = 0x12000, scoped, tag = 'internal scratch']
  #allocation2 [shape = 'f32[1,128]{1,0:T(1,128)}', space=vmem, size = 0x200, scoped, tag = 'scratch operand']
  #allocation3 [shape = 'f32[1,128]{1,0:T(1,128)}', space=vmem, size = 0x200, scoped, tag = 'scratch operand']
  %s0 = inlined_call_operand.hbm [shape: f32[2,256,128], index: 0, kind: input, shape index: {}]
  %s1 = inlined_call_operand.hbm [shape: f32[32,128], index: 1, kind: input, shape index: {}]
  %s2 = inlined_call_operand.hbm [shape: f32[2,1,128], index: 2, kind: output, shape index: {0}]
  %s3 = inlined_call_operand.hbm [shape: f32[2,1,128], index: 3, kind: output, shape index: {1}]
  %4 = xla_tuple %s2, %s3
  %s5 = sld [smem:[#allocation0]]
  $region65: #{tpu_custom_call.1} parent=0
    _
  %s7 = ssub.s32 1, %s5
  %s8 = scalar_select 0, %s7, %s5
  $region1: #{tpu_custom_call.1} parent=0
    #allocation4 [shape = 'u8[65536]{0}', space=vmem, size = 0x10000, scoped, tag = 'input window, operand 0']
    #allocation5 [shape = 's32[2]{0}', space=sflag, size = 0x8, scoped, tag = 'scoped memory for tpu_custom_call.1']
    #allocation6 [shape = 's32[2]{0}', space=sflag, size = 0x8, scoped, tag = 'scoped memory for tpu_custom_call.1']
    #allocation7 [shape = 'u8[16384]{0}', space=vmem, size = 0x4000, scoped, tag = 'input window, operand 1, single buffered']
    #allocation8 [shape = 's32[1]{0}', space=sflag, size = 0x4, scoped, tag = 'scoped memory for tpu_custom_call.1']
    #allocation9 [shape = 'u8[1024]{0}', space=vmem, size = 0x400, scoped, tag = 'output window, operand 0']
    #allocation10 [shape = 'u8[1024]{0}', space=vmem, size = 0x400, scoped, tag = 'output window, operand 1']
    #allocation11 [shape = 's32[2]{0}', space=sflag, size = 0x8, scoped, tag = 'scoped memory for tpu_custom_call.1']
    %9 = vsyncpa [#allocation5], 0
    %s10 = scalar_lea.sflag [#allocation5], 1
    %11 = vsyncpa %s10, 0
    %12 = vsyncpa [#allocation8], 0
    %13 = vsyncpa [#allocation6], 0
    %s14 = scalar_lea.sflag [#allocation6], 1
    %15 = vsyncpa %s14, 0
    %16 = vsyncpa [#allocation11], 0
    %s17 = scalar_lea.sflag [#allocation11], 1
    %18 = vsyncpa %s17, 0
    loop: start=0, step=1, limit=10
    $region2: #{tpu_custom_call.1} parent=1 // loop_pre_header
      _
    $region3: #{tpu_custom_call.1} parent=1 // loop_header
      %s20 = sphi 0, %s24
      %p21 = scmp.ge.s32.totalorder %s20, 10
      %s27 = sphi 0, %s39
      %s28 = sphi 0, %s35
      %s29 = sphi 0, %s27
      %s30 = sphi 0, %s28
      %s31 = sphi 0, %s29
      %s32 = sphi 0, %s30
      %s44 = sphi 0, %s46
      %s47 = sphi 0, %s44
      %s48 = sphi 0, %s47
      %s64 = sphi 0, %s48
      %s68 = sphi 0, %s68
      %s70 = sphi 0, %s68
      %s71 = sphi 0, %s70
      %s85 = sphi 0, %s71
      %s91 = sphi 0, %s93
      %s94 = sphi 0, %s91
      %s95 = sphi 0, %s94
      %s111 = sphi 0, %s95
      %s117 = sphi 0, %s119
      %s120 = sphi 0, %s117
      %s121 = sphi 0, %s120
      %s137 = sphi 0, %s121
    $region4: #{tpu_custom_call.1} parent=1 // loop_header_branch
      %23 = sbr.rel (%p21) target = $region8
    $region5: #{tpu_custom_call.1} parent=1 // loop_body
      %s25 = ssub.s32 %s20, 1
      %s26 = ssub.s32 %s20, 2
      %s33 = sadd.s32 1, %s28
      %p34 = scmp.ge.s32.totalorder %s33, 4
      %s35 = scalar_select %p34, 0, %s33
      %s36 = sadd.s32 1, %s27
      %s37 = scalar_select %p34, %s36, %s27
      %p38 = scmp.ge.s32.totalorder %s37, 2
      %s39 = scalar_select %p38, 0, %s37
      %s40 = ssub.s32 %s27, %s39
      %s41 = ssub.s32 %s28, %s35
      %s42 = sor.u32 %s40, %s41
      %p43 = scmp.eq.s32.totalorder %s42, 0
      %s45 = sadd.s32 %s44, 1
      %s46 = scalar_select %p43, %s44, %s45
      %p49 = pneg %p43
      %p50 = scmp.eq.s32.totalorder %s20, 7
      %p51 = por %p49, %p50
      %p52 = scmp.ne.s32.totalorder %s44, %s47
      %p53 = scmp.eq.s32.totalorder %s20, 0
      %p54 = por %p52, %p53
      %p55 = scmp.ne.s32.totalorder %s44, %s47
      %p56 = scmp.eq.s32.totalorder %s25, 7
      %p57 = por %p55, %p56
      %p58 = scmp.ne.s32.totalorder %s47, %s48
      %p59 = scmp.eq.s32.totalorder %s25, 0
      %p60 = por %p58, %p59
      %p61 = scmp.ne.s32.totalorder %s47, %s48
      %p62 = scmp.eq.s32.totalorder %s26, 7
      %p63 = por %p61, %p62
      %p65 = scmp.ne.s32.totalorder %s48, %s64
      %p66 = scmp.eq.s32.totalorder %s26, 0
      %p67 = por %p65, %p66
      %s69 = sadd.s32 %s68, 1
      %p72 = scmp.eq.s32.totalorder %s20, 7
      %p73 = scmp.ne.s32.totalorder %s68, %s70
      %p74 = scmp.eq.s32.totalorder %s20, 0
      %p75 = por %p73, %p74
      %p76 = scmp.ne.s32.totalorder %s68, %s70
      %p77 = scmp.eq.s32.totalorder %s25, 7
      %p78 = por %p76, %p77
      %p79 = scmp.ne.s32.totalorder %s70, %s71
      %p80 = scmp.eq.s32.totalorder %s25, 0
      %p81 = por %p79, %p80
      %p82 = scmp.ne.s32.totalorder %s70, %s71
      %p83 = scmp.eq.s32.totalorder %s26, 7
      %p84 = por %p82, %p83
      %p86 = scmp.ne.s32.totalorder %s71, %s85
      %p87 = scmp.eq.s32.totalorder %s26, 0
      %p88 = por %p86, %p87
      %s89 = ssub.s32 %s27, %s39
      %p90 = scmp.eq.s32.totalorder %s89, 0
      %s92 = sadd.s32 %s91, 1
      %s93 = scalar_select %p90, %s91, %s92
      %p96 = pneg %p90
      %p97 = scmp.eq.s32.totalorder %s20, 7
      %p98 = por %p96, %p97
      %p99 = scmp.ne.s32.totalorder %s91, %s94
      %p100 = scmp.eq.s32.totalorder %s20, 0
      %p101 = por %p99, %p100
      %p102 = scmp.ne.s32.totalorder %s91, %s94
      %p103 = scmp.eq.s32.totalorder %s25, 7
      %p104 = por %p102, %p103
      %p105 = scmp.ne.s32.totalorder %s94, %s95
      %p106 = scmp.eq.s32.totalorder %s25, 0
      %p107 = por %p105, %p106
      %p108 = scmp.ne.s32.totalorder %s94, %s95
      %p109 = scmp.eq.s32.totalorder %s26, 7
      %p110 = por %p108, %p109
      %p112 = scmp.ne.s32.totalorder %s95, %s111
      %p113 = scmp.eq.s32.totalorder %s26, 0
      %p114 = por %p112, %p113
      %s115 = ssub.s32 %s27, %s39
      %p116 = scmp.eq.s32.totalorder %s115, 0
      %s118 = sadd.s32 %s117, 1
      %s119 = scalar_select %p116, %s117, %s118
      %p122 = pneg %p116
      %p123 = scmp.eq.s32.totalorder %s20, 7
      %p124 = por %p122, %p123
      %p125 = scmp.ne.s32.totalorder %s117, %s120
      %p126 = scmp.eq.s32.totalorder %s20, 0
      %p127 = por %p125, %p126
      %p128 = scmp.ne.s32.totalorder %s117, %s120
      %p129 = scmp.eq.s32.totalorder %s25, 7
      %p130 = por %p128, %p129
      %p131 = scmp.ne.s32.totalorder %s120, %s121
      %p132 = scmp.eq.s32.totalorder %s25, 0
      %p133 = por %p131, %p132
      %p134 = scmp.ne.s32.totalorder %s120, %s121
      %p135 = scmp.eq.s32.totalorder %s26, 7
      %p136 = por %p134, %p135
      %p138 = scmp.ne.s32.totalorder %s121, %s137
      %p139 = scmp.eq.s32.totalorder %s26, 0
      %p140 = por %p138, %p139
      %p141 = scmp.le.s32.totalorder 1, %s20
      %p142 = scmp.lt.s32.totalorder %s20, 9
      %p143 = pnand %p141, %p142
      %p144 = pneg %p143
      // Predicated region
      $region9: #{tpu_custom_call.1} parent=5 // pred_check
        _
      $region10: #{tpu_custom_call.1} parent=5 // pred_check_branch
        %146 = sbr.rel (%p143) target = $region12
      $region11: #{tpu_custom_call.1} parent=5 // pred_region
        %s147 = ssub.s32 %s20, 1
        // Predicated region
        $region13: #{tpu_custom_call.1} parent=11 // pred_check
          %p148 = pneg %p81
        $region14: #{tpu_custom_call.1} parent=11 // pred_check_branch
          %150 = sbr.rel (%p148) target = $region16
        $region15: #{tpu_custom_call.1} parent=11 // pred_region
          %s152 = ssub.s32 512, 512
          %153 = vsyncadd [#allocation8], %s152
          %s154 = sshll.u32 [#allocation7], 4
          %s155 = int_to_ptr.vmem [resolvable:$true] %s154
          %160 = dma.hbm_to_vmem [thread:$0]  %s1, 512, %s155, [#allocation8], 128, 128, 8
        $region16: #{tpu_custom_call.1} parent=11 // pred_fallthru
          _
      $region12: #{tpu_custom_call.1} parent=5 // pred_fallthru
        _
      %p161 = scmp.lt.s32.totalorder %s20, 8
      // Predicated region
      $region17: #{tpu_custom_call.1} parent=5 // pred_check
        %p162 = pneg %p161
      $region18: #{tpu_custom_call.1} parent=5 // pred_check_branch
        %164 = sbr.rel (%p162) target = $region20
      $region19: #{tpu_custom_call.1} parent=5 // pred_region
        // Predicated region
        $region21: #{tpu_custom_call.1} parent=19 // pred_check
          %p165 = pneg %p54
        $region22: #{tpu_custom_call.1} parent=19 // pred_check_branch
          %167 = sbr.rel (%p165) target = $region24
        $region23: #{tpu_custom_call.1} parent=19 // pred_region
          %s168 = sand.u32 %s44, 1
          %s169 = scalar_lea.sflag [#allocation5], %s168
          %s170 = sand.u32 %s44, 1
          %s171 = smul.addr %s170, 64
          %s172 = scalar_lea.vmem [#allocation4], %s171
          %s173 = smul.u32 8, %s28
          %s175 = ssub.s32 1024, 1024
          %176 = vsyncadd %s169, %s175
          %s177 = smul.addr %s27, 32
          %s178 = sadd.s32 %s173, %s177
          %s179 = smul.addr %s178, 128
          %s180 = scalar_lea.hbm %s0, %s179
          %s181 = sshll.u32 %s172, 4
          %s182 = int_to_ptr.vmem [resolvable:$true] %s181
          %187 = dma.hbm_to_vmem [thread:$0]  %s180, 1024, %s182, %s169, 128, 128, 8
        $region24: #{tpu_custom_call.1} parent=19 // pred_fallthru
          _
      $region20: #{tpu_custom_call.1} parent=5 // pred_fallthru
        _
      %p188 = scmp.le.s32.totalorder 1, %s20
      %p189 = scmp.lt.s32.totalorder %s20, 9
      %p190 = pnand %p188, %p189
      %p191 = pneg %p190
      // Predicated region
      $region25: #{tpu_custom_call.1} parent=5 // pred_check
        _
      $region26: #{tpu_custom_call.1} parent=5 // pred_check_branch
        %193 = sbr.rel (%p190) target = $region28
      $region27: #{tpu_custom_call.1} parent=5 // pred_region
        %s194 = ssub.s32 %s20, 1
        %s195 = sand.u32 %s47, 1
        %s196 = scalar_lea.sflag [#allocation5], %s195
        %s197 = sand.u32 %s47, 1
        %s198 = smul.addr %s197, 64
        %s199 = scalar_lea.vmem [#allocation4], %s198
        // Predicated region
        $region29: #{tpu_custom_call.1} parent=27 // pred_check
          %p200 = pneg %p60
        $region30: #{tpu_custom_call.1} parent=27 // pred_check_branch
          %202 = sbr.rel (%p200) target = $region32
        $region31: #{tpu_custom_call.1} parent=27 // pred_region
          %203 = dma.done %s196, 1024
        $region32: #{tpu_custom_call.1} parent=27 // pred_fallthru
          _
        // Predicated region
        $region33: #{tpu_custom_call.1} parent=27 // pred_check
          %p204 = pneg %p81
        $region34: #{tpu_custom_call.1} parent=27 // pred_check_branch
          %206 = sbr.rel (%p204) target = $region36
        $region35: #{tpu_custom_call.1} parent=27 // pred_region
          %207 = dma.done [#allocation8], 512
        $region36: #{tpu_custom_call.1} parent=27 // pred_fallthru
          _
        %s208 = sand.u32 %s47, 1
        %s209 = scalar_lea.sflag [#allocation5], %s208
        %s210 = sand.u32 %s47, 1
        %s211 = smul.addr %s210, 64
        %s212 = scalar_lea.vmem [#allocation4], %s211
        %p213 = pneg %p60
        %p214 = pneg %p57
        %p215 = pneg %p81
        %p216 = pneg %p78
        %p217 = pneg %p107
        %p218 = pneg %p104
        %s219 = sand.u32 %s94, 1
        %s220 = scalar_lea.sflag [#allocation6], %s219
        %s221 = sand.u32 %s94, 1
        %s222 = scalar_lea.vmem [#allocation9], %s221
        %p223 = pneg %p133
        %p224 = pneg %p130
        %s225 = sand.u32 %s120, 1
        %s226 = scalar_lea.sflag [#allocation11], %s225
        %s227 = sand.u32 %s120, 1
        %s228 = scalar_lea.vmem [#allocation10], %s227
        %s229 = smul.u32 8, %s30
        %p230 = scmp.eq.s32.totalorder %s30, 0
        // Predicated region
        $region37: #{tpu_custom_call.1} parent=27 // pred_check
          %p231 = pneg %p230
        $region38: #{tpu_custom_call.1} parent=27 // pred_check_branch
          %233 = sbr.rel (%p231) target = $region40
        $region39: #{tpu_custom_call.1} parent=27 // pred_region
          %234 = vst [vmem:[#allocation2] sm:$0x1] 0.0
          %235 = vst [vmem:[#allocation3] sm:$0x1] 0.0
        $region40: #{tpu_custom_call.1} parent=27 // pred_fallthru
          _
        %v236 = vld [vmem:[%s199] sm:$0xff]
        %v237 = vld [vmem:[%s199 + $0x8] sm:$0xff]
        %v238 = vld [vmem:[%s199 + $0x10] sm:$0xff]
        %v239 = vld [vmem:[%s199 + $0x18] sm:$0xff]
        %v240 = vld [vmem:[%s199 + $0x20] sm:$0xff]
        %v241 = vld [vmem:[%s199 + $0x28] sm:$0xff]
        %v242 = vld [vmem:[%s199 + $0x30] sm:$0xff]
        %v243 = vld [vmem:[%s199 + $0x38] sm:$0xff]
        %v244 = vld [vmem:[#allocation2] sm:$0x1]
        %vm245 = vcmask 523264
        %v247 = vsel %vm245, 1.0, 0
        %249 = vmatprep.subr.mxu0 0.0
        %250 = vmatpush1.msra.mxu0 0.0
        %251 = vmatprep.subr.mxu0 0.0
        %252 = vmatpush1.msra.mxu0 0.0
        %253 = vmatprep.subr.mxu0 0.0
        %254 = vmatpush1.msra.mxu0 0.0
        %255 = vmatprep.subr.mxu0 0.0
        %256 = vmatpush1.msra.mxu0 0.0
        %257 = vmatprep.subr.mxu0 0.0
        %258 = vmatpush1.msra.mxu0 0.0
        %259 = vmatprep.subr.mxu0 0.0
        %260 = vmatpush1.msra.mxu0 0.0
        %261 = vmatprep.subr.mxu0 0.0
        %262 = vmatpush1.msra.mxu0 0.0
        %263 = vmatprep.subr.mxu0 0.0
        %264 = vmatpush1.msra.mxu0 0.0
        %265 = vmatprep.subr.mxu0 0.0
        %266 = vmatpush1.msra.mxu0 %v243
        %267 = vmatprep.subr.mxu0 0.0
        %268 = vmatpush1.msra.mxu0 %v242
        %269 = vmatprep.subr.mxu0 0.0
        %270 = vmatpush1.msra.mxu0 %v241
        %271 = vmatprep.subr.mxu0 0.0
        %272 = vmatpush1.msra.mxu0 %v240
        %273 = vmatprep.subr.mxu0 0.0
        %274 = vmatpush1.msra.mxu0 %v239
        %275 = vmatprep.subr.mxu0 0.0
        %276 = vmatpush1.msra.mxu0 %v238
        %277 = vmatprep.subr.mxu0 0.0
        %278 = vmatpush1.msra.mxu0 %v237
        %279 = vmatprep.subr.mxu0 0.0
        %280 = vmatpush1.msra.mxu0 %v236
        %281 = vmatprep.subr.mxu0 0.0
        %282 = vmatpush2.msra.mxu0 0.0
        %283 = vmatprep.subr.mxu0 0.0
        %284 = vmatpush2.msra.mxu0 0.0
        %285 = vmatprep.subr.mxu0 0.0
        %286 = vmatpush2.msra.mxu0 0.0
        %287 = vmatprep.subr.mxu0 0.0
        %288 = vmatpush2.msra.mxu0 0.0
        %289 = vmatprep.subr.mxu0 0.0
        %290 = vmatpush2.msra.mxu0 0.0
        %291 = vmatprep.subr.mxu0 0.0
        %292 = vmatpush2.msra.mxu0 0.0
        %293 = vmatprep.subr.mxu0 0.0
        %294 = vmatpush2.msra.mxu0 0.0
        %295 = vmatprep.subr.mxu0 0.0
        %296 = vmatpush2.msra.mxu0 0.0
        %297 = vmatprep.subr.mxu0 0.0
        %298 = vmatpush2.msra.mxu0 0.0
        %299 = vmatprep.subr.mxu0 0.0
        %300 = vmatpush2.msra.mxu0 0.0
        %301 = vmatprep.subr.mxu0 0.0
        %302 = vmatpush2.msra.mxu0 0.0
        %303 = vmatprep.subr.mxu0 0.0
        %304 = vmatpush2.msra.mxu0 0.0
        %305 = vmatprep.subr.mxu0 0.0
        %306 = vmatpush2.msra.mxu0 0.0
        %307 = vmatprep.subr.mxu0 0.0
        %308 = vmatpush2.msra.mxu0 0.0
        %309 = vmatprep.subr.mxu0 0.0
        %310 = vmatpush2.msra.mxu0 0.0
        %311 = vmatprep.subr.mxu0 0.0
        %312 = vmatpush2.msra.mxu0 0.0
        %313 = vmatprep.mubr.f32.mxu0 0.0
        %314 = vmatmul.mubr.f32.gmra.mxu0 %v247
        %v315 = vpop.f32.mrf.mxu0
        %v316 = vadd.f32 0.0, %v315
        %v317 = vpop.f32.mrf.mxu0
        %318 = vdwg.mxu0
        %v319 = vadd.f32 %v244, %v316
        %320 = vst [vmem:[#allocation2] sm:$0x1] %v319
        %v321 = vld [vmem:[#allocation3] sm:$0x1]
        %v322 = vmul.f32 %v236, %v236
        %v323 = vmul.f32 %v237, %v237
        %v324 = vmul.f32 %v238, %v238
        %v325 = vmul.f32 %v239, %v239
        %v326 = vmul.f32 %v240, %v240
        %v327 = vmul.f32 %v241, %v241
        %v328 = vmul.f32 %v242, %v242
        %v329 = vmul.f32 %v243, %v243
        %330 = vmatprep.subr.mxu0 0.0
        %331 = vmatpush1.msra.mxu0 0.0
        %332 = vmatprep.subr.mxu0 0.0
        %333 = vmatpush1.msra.mxu0 0.0
        %334 = vmatprep.subr.mxu0 0.0
        %335 = vmatpush1.msra.mxu0 0.0
        %336 = vmatprep.subr.mxu0 0.0
        %337 = vmatpush1.msra.mxu0 0.0
        %338 = vmatprep.subr.mxu0 0.0
        %339 = vmatpush1.msra.mxu0 0.0
        %340 = vmatprep.subr.mxu0 0.0
        %341 = vmatpush1.msra.mxu0 0.0
        %342 = vmatprep.subr.mxu0 0.0
        %343 = vmatpush1.msra.mxu0 0.0
        %344 = vmatprep.subr.mxu0 0.0
        %345 = vmatpush1.msra.mxu0 0.0
        %346 = vmatprep.subr.mxu0 0.0
        %347 = vmatpush1.msra.mxu0 %v329
        %348 = vmatprep.subr.mxu0 0.0
        %349 = vmatpush1.msra.mxu0 %v328
        %350 = vmatprep.subr.mxu0 0.0
        %351 = vmatpush1.msra.mxu0 %v327
        %352 = vmatprep.subr.mxu0 0.0
        %353 = vmatpush1.msra.mxu0 %v326
        %354 = vmatprep.subr.mxu0 0.0
        %355 = vmatpush1.msra.mxu0 %v325
        %356 = vmatprep.subr.mxu0 0.0
        %357 = vmatpush1.msra.mxu0 %v324
        %358 = vmatprep.subr.mxu0 0.0
        %359 = vmatpush1.msra.mxu0 %v323
        %360 = vmatprep.subr.mxu0 0.0
        %361 = vmatpush1.msra.mxu0 %v322
        %362 = vmatprep.subr.mxu0 0.0
        %363 = vmatpush2.msra.mxu0 0.0
        %364 = vmatprep.subr.mxu0 0.0
        %365 = vmatpush2.msra.mxu0 0.0
        %366 = vmatprep.subr.mxu0 0.0
        %367 = vmatpush2.msra.mxu0 0.0
        %368 = vmatprep.subr.mxu0 0.0
        %369 = vmatpush2.msra.mxu0 0.0
        %370 = vmatprep.subr.mxu0 0.0
        %371 = vmatpush2.msra.mxu0 0.0
        %372 = vmatprep.subr.mxu0 0.0
        %373 = vmatpush2.msra.mxu0 0.0
        %374 = vmatprep.subr.mxu0 0.0
        %375 = vmatpush2.msra.mxu0 0.0
        %376 = vmatprep.subr.mxu0 0.0
        %377 = vmatpush2.msra.mxu0 0.0
        %378 = vmatprep.subr.mxu0 0.0
        %379 = vmatpush2.msra.mxu0 0.0
        %380 = vmatprep.subr.mxu0 0.0
        %381 = vmatpush2.msra.mxu0 0.0
        %382 = vmatprep.subr.mxu0 0.0
        %383 = vmatpush2.msra.mxu0 0.0
        %384 = vmatprep.subr.mxu0 0.0
        %385 = vmatpush2.msra.mxu0 0.0
        %386 = vmatprep.subr.mxu0 0.0
        %387 = vmatpush2.msra.mxu0 0.0
        %388 = vmatprep.subr.mxu0 0.0
        %389 = vmatpush2.msra.mxu0 0.0
        %390 = vmatprep.subr.mxu0 0.0
        %391 = vmatpush2.msra.mxu0 0.0
        %392 = vmatprep.subr.mxu0 0.0
        %393 = vmatpush2.msra.mxu0 0.0
        %394 = vmatprep.mubr.f32.mxu0 0.0
        %395 = vmatmul.mubr.f32.gmra.mxu0 %v247
        %v396 = vpop.f32.mrf.mxu0
        %v397 = vadd.f32 0.0, %v396
        %v398 = vpop.f32.mrf.mxu0
        %399 = vdwg.mxu0
        %v400 = vadd.f32 %v321, %v397
        %401 = vst [vmem:[#allocation3] sm:$0x1] %v400
        %p402 = scmp.eq.s32.totalorder %s30, 3
        // Predicated region
        $region41: #{tpu_custom_call.1} parent=27 // pred_check
          %p403 = pneg %p402
        $region42: #{tpu_custom_call.1} parent=27 // pred_check_branch
          %405 = sbr.rel (%p403) target = $region44
        $region43: #{tpu_custom_call.1} parent=27 // pred_region
          %v406 = vld [vmem:[#allocation7] sm:$0xff]
          %v407 = vld [vmem:[#allocation7 + $0x8] sm:$0xff]
          %v408 = vld [vmem:[#allocation7 + $0x10] sm:$0xff]
          %v409 = vld [vmem:[#allocation7 + $0x18] sm:$0xff]
          %v410 = vld [vmem:[#allocation2] sm:$0x1]
          %411 = vmatprep.subr.mxu0 0.0
          %412 = vmatpush1.xpose.msra.mxu0 0.0
          %413 = vmatprep.subr.mxu0 0.0
          %414 = vmatpush1.xpose.msra.mxu0 0.0
          %415 = vmatprep.subr.mxu0 0.0
          %416 = vmatpush1.xpose.msra.mxu0 0.0
          %417 = vmatprep.subr.mxu0 0.0
          %418 = vmatpush1.xpose.msra.mxu0 0.0
          %419 = vmatprep.subr.mxu0 0.0
          %420 = vmatpush1.xpose.msra.mxu0 0.0
          %421 = vmatprep.subr.mxu0 0.0
          %422 = vmatpush1.xpose.msra.mxu0 0.0
          %423 = vmatprep.subr.mxu0 0.0
          %424 = vmatpush1.xpose.msra.mxu0 0.0
          %425 = vmatprep.subr.mxu0 0.0
          %426 = vmatpush1.xpose.msra.mxu0 0.0
          %427 = vmatprep.subr.mxu0 0.0
          %428 = vmatpush1.xpose.msra.mxu0 0.0
          %429 = vmatprep.subr.mxu0 0.0
          %430 = vmatpush1.xpose.msra.mxu0 0.0
          %431 = vmatprep.subr.mxu0 0.0
          %432 = vmatpush1.xpose.msra.mxu0 0.0
          %433 = vmatprep.subr.mxu0 0.0
          %434 = vmatpush1.xpose.msra.mxu0 0.0
          %435 = vmatprep.subr.mxu0 0.0
          %436 = vmatpush1.xpose.msra.mxu0 %v409
          %437 = vmatprep.subr.mxu0 0.0
          %438 = vmatpush1.xpose.msra.mxu0 %v408
          %439 = vmatprep.subr.mxu0 0.0
          %440 = vmatpush1.xpose.msra.mxu0 %v407
          %441 = vmatprep.subr.mxu0 0.0
          %442 = vmatpush1.xpose.msra.mxu0 %v406
          %443 = vmatprep.subr.mxu0 0.0
          %444 = vmatpush2.xpose.msra.mxu0 0.0
          %445 = vmatprep.subr.mxu0 0.0
          %446 = vmatpush2.xpose.msra.mxu0 0.0
          %447 = vmatprep.subr.mxu0 0.0
          %448 = vmatpush2.xpose.msra.mxu0 0.0
          %449 = vmatprep.subr.mxu0 0.0
          %450 = vmatpush2.xpose.msra.mxu0 0.0
          %451 = vmatprep.subr.mxu0 0.0
          %452 = vmatpush2.xpose.msra.mxu0 0.0
          %453 = vmatprep.subr.mxu0 0.0
          %454 = vmatpush2.xpose.msra.mxu0 0.0
          %455 = vmatprep.subr.mxu0 0.0
          %456 = vmatpush2.xpose.msra.mxu0 0.0
          %457 = vmatprep.subr.mxu0 0.0
          %458 = vmatpush2.xpose.msra.mxu0 0.0
          %459 = vmatprep.subr.mxu0 0.0
          %460 = vmatpush2.xpose.msra.mxu0 0.0
          %461 = vmatprep.subr.mxu0 0.0
          %462 = vmatpush2.xpose.msra.mxu0 0.0
          %463 = vmatprep.subr.mxu0 0.0
          %464 = vmatpush2.xpose.msra.mxu0 0.0
          %465 = vmatprep.subr.mxu0 0.0
          %466 = vmatpush2.xpose.msra.mxu0 0.0
          %467 = vmatprep.subr.mxu0 0.0
          %468 = vmatpush2.xpose.msra.mxu0 0.0
          %469 = vmatprep.subr.mxu0 0.0
          %470 = vmatpush2.xpose.msra.mxu0 0.0
          %471 = vmatprep.subr.mxu0 0.0
          %472 = vmatpush2.xpose.msra.mxu0 0.0
          %473 = vmatprep.subr.mxu0 0.0
          %474 = vmatpush2.xpose.msra.mxu0 0.0
          %475 = vmatprep.mubr.f32.mxu0 0.0
          %476 = vmatmul.mubr.f32.gmra.mxu0 %v410
          %v477 = vpop.f32.mrf.mxu0
          %v478 = vadd.f32 0.0, %v477
          %v479 = vpop.f32.mrf.mxu0
          %480 = vdwg.mxu0
          %v481 = vld [vmem:[#allocation3] sm:$0x1]
          %482 = vmatprep.subr.mxu0 0.0
          %483 = vmatpush1.xpose.msra.mxu0 0.0
          %484 = vmatprep.subr.mxu0 0.0
          %485 = vmatpush1.xpose.msra.mxu0 0.0
          %486 = vmatprep.subr.mxu0 0.0
          %487 = vmatpush1.xpose.msra.mxu0 0.0
          %488 = vmatprep.subr.mxu0 0.0
          %489 = vmatpush1.xpose.msra.mxu0 0.0
          %490 = vmatprep.subr.mxu0 0.0
          %491 = vmatpush1.xpose.msra.mxu0 0.0
          %492 = vmatprep.subr.mxu0 0.0
          %493 = vmatpush1.xpose.msra.mxu0 0.0
          %494 = vmatprep.subr.mxu0 0.0
          %495 = vmatpush1.xpose.msra.mxu0 0.0
          %496 = vmatprep.subr.mxu0 0.0
          %497 = vmatpush1.xpose.msra.mxu0 0.0
          %498 = vmatprep.subr.mxu0 0.0
          %499 = vmatpush1.xpose.msra.mxu0 0.0
          %500 = vmatprep.subr.mxu0 0.0
          %501 = vmatpush1.xpose.msra.mxu0 0.0
          %502 = vmatprep.subr.mxu0 0.0
          %503 = vmatpush1.xpose.msra.mxu0 0.0
          %504 = vmatprep.subr.mxu0 0.0
          %505 = vmatpush1.xpose.msra.mxu0 0.0
          %506 = vmatprep.subr.mxu0 0.0
          %507 = vmatpush1.xpose.msra.mxu0 %v409
          %508 = vmatprep.subr.mxu0 0.0
          %509 = vmatpush1.xpose.msra.mxu0 %v408
          %510 = vmatprep.subr.mxu0 0.0
          %511 = vmatpush1.xpose.msra.mxu0 %v407
          %512 = vmatprep.subr.mxu0 0.0
          %513 = vmatpush1.xpose.msra.mxu0 %v406
          %514 = vmatprep.subr.mxu0 0.0
          %515 = vmatpush2.xpose.msra.mxu0 0.0
          %516 = vmatprep.subr.mxu0 0.0
          %517 = vmatpush2.xpose.msra.mxu0 0.0
          %518 = vmatprep.subr.mxu0 0.0
          %519 = vmatpush2.xpose.msra.mxu0 0.0
          %520 = vmatprep.subr.mxu0 0.0
          %521 = vmatpush2.xpose.msra.mxu0 0.0
          %522 = vmatprep.subr.mxu0 0.0
          %523 = vmatpush2.xpose.msra.mxu0 0.0
          %524 = vmatprep.subr.mxu0 0.0
          %525 = vmatpush2.xpose.msra.mxu0 0.0
          %526 = vmatprep.subr.mxu0 0.0
          %527 = vmatpush2.xpose.msra.mxu0 0.0
          %528 = vmatprep.subr.mxu0 0.0
          %529 = vmatpush2.xpose.msra.mxu0 0.0
          %530 = vmatprep.subr.mxu0 0.0
          %531 = vmatpush2.xpose.msra.mxu0 0.0
          %532 = vmatprep.subr.mxu0 0.0
          %533 = vmatpush2.xpose.msra.mxu0 0.0
          %534 = vmatprep.subr.mxu0 0.0
          %535 = vmatpush2.xpose.msra.mxu0 0.0
          %536 = vmatprep.subr.mxu0 0.0
          %537 = vmatpush2.xpose.msra.mxu0 0.0
          %538 = vmatprep.subr.mxu0 0.0
          %539 = vmatpush2.xpose.msra.mxu0 0.0
          %540 = vmatprep.subr.mxu0 0.0
          %541 = vmatpush2.xpose.msra.mxu0 0.0
          %542 = vmatprep.subr.mxu0 0.0
          %543 = vmatpush2.xpose.msra.mxu0 0.0
          %544 = vmatprep.subr.mxu0 0.0
          %545 = vmatpush2.xpose.msra.mxu0 0.0
          %546 = vmatprep.mubr.f32.mxu0 0.0
          %547 = vmatmul.mubr.f32.gmra.mxu0 %v481
          %v548 = vpop.f32.mrf.mxu0
          %v549 = vadd.f32 0.0, %v548
          %v550 = vpop.f32.mrf.mxu0
          %551 = vdwg.mxu0
          %v552 = vmul.f32 %v478, 0.0009765625
          %v553 = vmul.f32 %v549, 0.0009765625
          %v554 = vmul.f32 %v552, %v552
          %v555 = vsub.f32 %v553, %v554
          %v556 = vadd.f32 %v555, 1e-06
          %v557 = vrsqrt.pop %v556
          %vm558 = vcmask 261120
          %v560 = vsel %vm558, %v552, 0
          %562 = vmatprep.subr.mxu0 0.0
          %563 = vmatpush1.msra.mxu0 0.0
          %564 = vmatprep.subr.mxu0 0.0
          %565 = vmatpush1.msra.mxu0 0.0
          %566 = vmatprep.subr.mxu0 0.0
          %567 = vmatpush1.msra.mxu0 0.0
          %568 = vmatprep.subr.mxu0 0.0
          %569 = vmatpush1.msra.mxu0 0.0
          %570 = vmatprep.subr.mxu0 0.0
          %571 = vmatpush1.msra.mxu0 0.0
          %572 = vmatprep.subr.mxu0 0.0
          %573 = vmatpush1.msra.mxu0 0.0
          %574 = vmatprep.subr.mxu0 0.0
          %575 = vmatpush1.msra.mxu0 0.0
          %576 = vmatprep.subr.mxu0 0.0
          %577 = vmatpush1.msra.mxu0 0.0
          %578 = vmatprep.subr.mxu0 0.0
          %579 = vmatpush1.msra.mxu0 0.0
          %580 = vmatprep.subr.mxu0 0.0
          %581 = vmatpush1.msra.mxu0 0.0
          %582 = vmatprep.subr.mxu0 0.0
          %583 = vmatpush1.msra.mxu0 0.0
          %584 = vmatprep.subr.mxu0 0.0
          %585 = vmatpush1.msra.mxu0 0.0
          %586 = vmatprep.subr.mxu0 0.0
          %587 = vmatpush1.msra.mxu0 %v409
          %588 = vmatprep.subr.mxu0 0.0
          %589 = vmatpush1.msra.mxu0 %v408
          %590 = vmatprep.subr.mxu0 0.0
          %591 = vmatpush1.msra.mxu0 %v407
          %592 = vmatprep.subr.mxu0 0.0
          %593 = vmatpush1.msra.mxu0 %v406
          %594 = vmatprep.subr.mxu0 0.0
          %595 = vmatpush2.msra.mxu0 0.0
          %596 = vmatprep.subr.mxu0 0.0
          %597 = vmatpush2.msra.mxu0 0.0
          %598 = vmatprep.subr.mxu0 0.0
          %599 = vmatpush2.msra.mxu0 0.0
          %600 = vmatprep.subr.mxu0 0.0
          %601 = vmatpush2.msra.mxu0 0.0
          %602 = vmatprep.subr.mxu0 0.0
          %603 = vmatpush2.msra.mxu0 0.0
          %604 = vmatprep.subr.mxu0 0.0
          %605 = vmatpush2.msra.mxu0 0.0
          %606 = vmatprep.subr.mxu0 0.0
          %607 = vmatpush2.msra.mxu0 0.0
          %608 = vmatprep.subr.mxu0 0.0
          %609 = vmatpush2.msra.mxu0 0.0
          %610 = vmatprep.subr.mxu0 0.0
          %611 = vmatpush2.msra.mxu0 0.0
          %612 = vmatprep.subr.mxu0 0.0
          %613 = vmatpush2.msra.mxu0 0.0
          %614 = vmatprep.subr.mxu0 0.0
          %615 = vmatpush2.msra.mxu0 0.0
          %616 = vmatprep.subr.mxu0 0.0
          %617 = vmatpush2.msra.mxu0 0.0
          %618 = vmatprep.subr.mxu0 0.0
          %619 = vmatpush2.msra.mxu0 0.0
          %620 = vmatprep.subr.mxu0 0.0
          %621 = vmatpush2.msra.mxu0 0.0
          %622 = vmatprep.subr.mxu0 0.0
          %623 = vmatpush2.msra.mxu0 0.0
          %624 = vmatprep.subr.mxu0 0.0
          %625 = vmatpush2.msra.mxu0 0.0
          %626 = vmatprep.mubr.f32.mxu0 0.0
          %627 = vmatmul.mubr.f32.gmra.mxu0 %v560
          %v628 = vpop.f32.mrf.mxu0
          %v629 = vadd.f32 0.0, %v628
          %v630 = vpop.f32.mrf.mxu0
          %631 = vdwg.mxu0
          %632 = vst [vmem:[%s222] sm:$0x1] %v629
          %v634 = vsel %vm558, %v557, 0
          %636 = vmatprep.subr.mxu0 0.0
          %637 = vmatpush1.msra.mxu0 0.0
          %638 = vmatprep.subr.mxu0 0.0
          %639 = vmatpush1.msra.mxu0 0.0
          %640 = vmatprep.subr.mxu0 0.0
          %641 = vmatpush1.msra.mxu0 0.0
          %642 = vmatprep.subr.mxu0 0.0
          %643 = vmatpush1.msra.mxu0 0.0
          %644 = vmatprep.subr.mxu0 0.0
          %645 = vmatpush1.msra.mxu0 0.0
          %646 = vmatprep.subr.mxu0 0.0
          %647 = vmatpush1.msra.mxu0 0.0
          %648 = vmatprep.subr.mxu0 0.0
          %649 = vmatpush1.msra.mxu0 0.0
          %650 = vmatprep.subr.mxu0 0.0
          %651 = vmatpush1.msra.mxu0 0.0
          %652 = vmatprep.subr.mxu0 0.0
          %653 = vmatpush1.msra.mxu0 0.0
          %654 = vmatprep.subr.mxu0 0.0
          %655 = vmatpush1.msra.mxu0 0.0
          %656 = vmatprep.subr.mxu0 0.0
          %657 = vmatpush1.msra.mxu0 0.0
          %658 = vmatprep.subr.mxu0 0.0
          %659 = vmatpush1.msra.mxu0 0.0
          %660 = vmatprep.subr.mxu0 0.0
          %661 = vmatpush1.msra.mxu0 %v409
          %662 = vmatprep.subr.mxu0 0.0
          %663 = vmatpush1.msra.mxu0 %v408
          %664 = vmatprep.subr.mxu0 0.0
          %665 = vmatpush1.msra.mxu0 %v407
          %666 = vmatprep.subr.mxu0 0.0
          %667 = vmatpush1.msra.mxu0 %v406
          %668 = vmatprep.subr.mxu0 0.0
          %669 = vmatpush2.msra.mxu0 0.0
          %670 = vmatprep.subr.mxu0 0.0
          %671 = vmatpush2.msra.mxu0 0.0
          %672 = vmatprep.subr.mxu0 0.0
          %673 = vmatpush2.msra.mxu0 0.0
          %674 = vmatprep.subr.mxu0 0.0
          %675 = vmatpush2.msra.mxu0 0.0
          %676 = vmatprep.subr.mxu0 0.0
          %677 = vmatpush2.msra.mxu0 0.0
          %678 = vmatprep.subr.mxu0 0.0
          %679 = vmatpush2.msra.mxu0 0.0
          %680 = vmatprep.subr.mxu0 0.0
          %681 = vmatpush2.msra.mxu0 0.0
          %682 = vmatprep.subr.mxu0 0.0
          %683 = vmatpush2.msra.mxu0 0.0
          %684 = vmatprep.subr.mxu0 0.0
          %685 = vmatpush2.msra.mxu0 0.0
          %686 = vmatprep.subr.mxu0 0.0
          %687 = vmatpush2.msra.mxu0 0.0
          %688 = vmatprep.subr.mxu0 0.0
          %689 = vmatpush2.msra.mxu0 0.0
          %690 = vmatprep.subr.mxu0 0.0
          %691 = vmatpush2.msra.mxu0 0.0
          %692 = vmatprep.subr.mxu0 0.0
          %693 = vmatpush2.msra.mxu0 0.0
          %694 = vmatprep.subr.mxu0 0.0
          %695 = vmatpush2.msra.mxu0 0.0
          %696 = vmatprep.subr.mxu0 0.0
          %697 = vmatpush2.msra.mxu0 0.0
          %698 = vmatprep.subr.mxu0 0.0
          %699 = vmatpush2.msra.mxu0 0.0
          %700 = vmatprep.mubr.f32.mxu0 0.0
          %701 = vmatmul.mubr.f32.gmra.mxu0 %v634
          %v702 = vpop.f32.mrf.mxu0
          %v703 = vadd.f32 0.0, %v702
          %v704 = vpop.f32.mrf.mxu0
          %705 = vdwg.mxu0
          %706 = vst [vmem:[%s228] sm:$0x1] %v703
        $region44: #{tpu_custom_call.1} parent=27 // pred_fallthru
          _
        %s707 = sand.u32 %s94, 1
        %s708 = scalar_lea.sflag [#allocation6], %s707
        %s709 = sand.u32 %s94, 1
        %s710 = scalar_lea.vmem [#allocation9], %s709
        %s711 = sand.u32 %s120, 1
        %s712 = scalar_lea.sflag [#allocation11], %s711
        %s713 = sand.u32 %s120, 1
        %s714 = scalar_lea.vmem [#allocation10], %s713
        // Predicated region
        $region45: #{tpu_custom_call.1} parent=27 // pred_check
          %p715 = pneg %p104
        $region46: #{tpu_custom_call.1} parent=27 // pred_check_branch
          %717 = sbr.rel (%p715) target = $region48
        $region47: #{tpu_custom_call.1} parent=27 // pred_region
          %s719 = ssub.s32 16, 16
          %720 = vsyncadd %s708, %s719
          %s721 = smul.addr %s29, 16
          %s722 = scalar_lea.hbm %s2, %s721
          %s724 = sshll.u32 %s710, 4
          %s725 = int_to_ptr.vmem [resolvable:$true] %s724
          %727 = dma.vmem_to_hbm [thread:$0]  %s725, 16, %s722, %s708
        $region48: #{tpu_custom_call.1} parent=27 // pred_fallthru
          _
        // Predicated region
        $region49: #{tpu_custom_call.1} parent=27 // pred_check
          %p728 = pneg %p130
        $region50: #{tpu_custom_call.1} parent=27 // pred_check_branch
          %730 = sbr.rel (%p728) target = $region52
        $region51: #{tpu_custom_call.1} parent=27 // pred_region
          %s732 = ssub.s32 16, 16
          %733 = vsyncadd %s712, %s732
          %s734 = smul.addr %s29, 16
          %s735 = scalar_lea.hbm %s3, %s734
          %s737 = sshll.u32 %s714, 4
          %s738 = int_to_ptr.vmem [resolvable:$true] %s737
          %740 = dma.vmem_to_hbm [thread:$0]  %s738, 16, %s735, %s712
        $region52: #{tpu_custom_call.1} parent=27 // pred_fallthru
          _
      $region28: #{tpu_custom_call.1} parent=5 // pred_fallthru
        _
      %p741 = scmp.le.s32.totalorder 2, %s20
      // Predicated region
      $region53: #{tpu_custom_call.1} parent=5 // pred_check
        %p742 = pneg %p741
      $region54: #{tpu_custom_call.1} parent=5 // pred_check_branch
        %744 = sbr.rel (%p742) target = $region56
      $region55: #{tpu_custom_call.1} parent=5 // pred_region
        %s745 = ssub.s32 %s20, 2
        // Predicated region
        $region57: #{tpu_custom_call.1} parent=55 // pred_check
          %p746 = pneg %p110
        $region58: #{tpu_custom_call.1} parent=55 // pred_check_branch
          %748 = sbr.rel (%p746) target = $region60
        $region59: #{tpu_custom_call.1} parent=55 // pred_region
          %s749 = sand.u32 %s95, 1
          %s750 = scalar_lea.sflag [#allocation6], %s749
          %s751 = sand.u32 %s95, 1
          %s752 = scalar_lea.vmem [#allocation9], %s751
          %753 = dma.done %s750, 16
        $region60: #{tpu_custom_call.1} parent=55 // pred_fallthru
          _
        // Predicated region
        $region61: #{tpu_custom_call.1} parent=55 // pred_check
          %p754 = pneg %p136
        $region62: #{tpu_custom_call.1} parent=55 // pred_check_branch
          %756 = sbr.rel (%p754) target = $region64
        $region63: #{tpu_custom_call.1} parent=55 // pred_region
          %s757 = sand.u32 %s121, 1
          %s758 = scalar_lea.sflag [#allocation11], %s757
          %s759 = sand.u32 %s121, 1
          %s760 = scalar_lea.vmem [#allocation10], %s759
          %761 = dma.done %s758, 16
        $region64: #{tpu_custom_call.1} parent=55 // pred_fallthru
          _
      $region56: #{tpu_custom_call.1} parent=5 // pred_fallthru
        _
    $region6: #{tpu_custom_call.1} parent=1 // loop_footer
      %s24 = sadd.s32 1, %s20
    $region7: #{tpu_custom_call.1} parent=1 // loop_footer_branch
      %19 = sbr.rel target = $region3
    $region8: #{tpu_custom_call.1} parent=1 // loop_exit
      _
    %762 = vsyncpa [#allocation5], 1
    %s763 = scalar_lea.sflag [#allocation5], 1
    %764 = vsyncpa %s763, 1
    %765 = vsyncpa [#allocation8], 1
    %766 = vsyncpa [#allocation6], 1
    %s767 = scalar_lea.sflag [#allocation6], 1
    %768 = vsyncpa %s767, 1
    %769 = vsyncpa [#allocation11], 1
    %s770 = scalar_lea.sflag [#allocation11], 1
    %771 = vsyncpa %s770, 1

</llo_original>
